<compile_context>
chip_gen: v7x
topology: tpu7x:2x2x1
jax: 0.10.0
libtpu: 0.0.40
codegen_flags: <defaults>
</compile_context>

<pallas_src>
import jax
import jax.numpy as jnp
from jax.experimental import pallas as pl
from jax.experimental.pallas import tpu as pltpu


# ----------------------------------------------------------------------------
# kernel
# ----------------------------------------------------------------------------
def make_scorers_kernel(share_scorer: bool, classme: bool):
    """Build a kernel specialized (at trace time) for the static config flags."""

    def body(emb_ref, mask_ref, w_ref, b_ref, cw_ref, cb_ref, out_ref):
        emb = emb_ref[...].astype(jnp.float32)   # [bt, N*D]  (bf16 inputs upcast here)
        mask = mask_ref[...].astype(jnp.float32) # [bt, N]

        # ---- all scorers in one MXU matmul ----------------------------------
        # w_ref is a block-diagonal [N*D, N] weight: column n holds scorer n's
        # weights at rows n*D .. (n+1)*D, zeros elsewhere, so
        #   s[b, n] = <emb[b, n, :], w_n>   for every (row, node) at once.
        s = jnp.dot(emb, w_ref[...], preferred_element_type=jnp.float32)  # [bt, N]

        if share_scorer:
            # torch applies NO sigmoid on the shared-scorer path (faithful).
            prob = s + b_ref[0, 0]                       # scalar bias from SMEM
        else:
            s = s + b_ref[...]                           # [1, N] per-node bias
            # sigmoid(x) = 0.5*(tanh(0.5*x)+1): one EUP transcendental, stable.
            prob = 0.5 * (jnp.tanh(0.5 * s) + 1.0)

        prob = prob * mask                               # [bt, N]

        # ---- head -------------------------------------------------------------
        if classme:
            out = jnp.sum(prob * cw_ref[...], axis=-1, keepdims=True) \
                  + cb_ref[0, 0]                         # [bt, 1]
        else:
            num = jnp.sum(prob, axis=-1, keepdims=True)  # [bt, 1]
            den = jnp.sum(mask, axis=-1, keepdims=True)  # [bt, 1]
            out = num * pl.reciprocal(den, approx=False)

        out_ref[...] = out.astype(out_ref.dtype)

    if classme:
        def kernel(emb_ref, mask_ref, w_ref, b_ref, cw_ref, cb_ref, out_ref):
            body(emb_ref, mask_ref, w_ref, b_ref, cw_ref, cb_ref, out_ref)
    else:
        def kernel(emb_ref, mask_ref, w_ref, b_ref, out_ref):
            body(emb_ref, mask_ref, w_ref, b_ref, None, None, out_ref)
    return kernel


# ----------------------------------------------------------------------------
# wrapper helpers
# ----------------------------------------------------------------------------
def _divisors(n):
    ds, d = set(), 1
    while d * d <= n:
        if n % d == 0:
            ds.add(d)
            ds.add(n // d)
        d += 1
    return sorted(ds)


def _pick_batch_tile(B, row_bytes, target_bytes=2 << 20, min_steps=8):
    """Largest divisor of B that (a) keeps the per-step tile under ~target_bytes
    (fits every generation's scoped VMEM with double-buffering headroom) and
    (b) leaves >= min_steps grid steps (DMA pipelining + both v7x TCs),
    preferring multiples of 8 for the sublane axis."""
    if B <= 8:
        return B
    divisors = _divisors(B)
    cap_rows = max(1, target_bytes // max(row_bytes, 1))
    good = [d for d in divisors if d <= cap_rows and B // d >= min_steps]
    if not good:
        good = [d for d in divisors if d <= cap_rows] or divisors
    mult8 = [d for d in good if d % 8 == 0]
    bt = max(mult8) if mult8 else max(good)
    if bt % 8 != 0 and bt != B:       # respect the (8, 128) BlockSpec rule
        bt = B
    return bt


def _pack_block_diag(w, N, D, dtype):
    """Pack per-node scorer weights [N, D] (or shared [1, D]) into a
    block-diagonal [N*D, N] weight: W[n*D + d, n] = w[n, d]."""
    w_rows = jnp.broadcast_to(w.astype(dtype), (N, D))          # [N, D]
    eye = jnp.eye(N, dtype=dtype)                               # [N, N]
    return (w_rows[:, :, None] * eye[:, None, :]).reshape(N * D, N)


# ----------------------------------------------------------------------------
# forward
# ----------------------------------------------------------------------------
def scorers_no_id_forward(embeddings, mask, params, *,
                          share_scorer=False, classme=False, batch_tile=None):
    """embeddings: [B, N, D], mask: [B, N].  Returns prob: [B]."""
    B, N, D = embeddings.shape

    # Lane-dense streaming layout: [B, N*D] (free metadata reshape, N*D=256 for
    # the example so no 128-lane padding waste on the big tensor).
    emb_flat = embeddings.reshape(B, N * D)
    w_big = _pack_block_diag(params["w"], N, D, jnp.float32)    # [N*D, N]

    row_bytes = N * D * emb_flat.dtype.itemsize + N * mask.dtype.itemsize
    bt = _pick_batch_tile(B, row_bytes) if batch_tile is None else batch_tile
    assert B % bt == 0 and (bt == B or bt % 8 == 0), (B, bt)
    grid = (B // bt,)

    in_specs = [
        pl.BlockSpec((bt, N * D), lambda i: (i, 0)),            # embeddings tile
        pl.BlockSpec((bt, N), lambda i: (i, 0)),                # mask tile
        pl.BlockSpec((N * D, N), lambda i: (0, 0)),             # block-diag weight
    ]
    args = [emb_flat, mask, w_big]

    if share_scorer:
        # scalar bias -> SMEM (no padded VMEM tile / vreg broadcast)
        in_specs.append(pl.BlockSpec(memory_space=pltpu.MemorySpace.SMEM))
        args.append(params["b"].reshape(1, 1))
    else:
        in_specs.append(pl.BlockSpec((1, N), lambda i: (0, 0)))
        args.append(params["b"].reshape(1, N))

    if classme:
        in_specs.append(pl.BlockSpec((1, N), lambda i: (0, 0)))              # cls weight
        in_specs.append(pl.BlockSpec(memory_space=pltpu.MemorySpace.SMEM))   # cls bias
        args += [params["cls_w"].reshape(1, N), params["cls_b"].reshape(1, 1)]

    out = pl.pallas_call(
        make_scorers_kernel(share_scorer, classme),
        out_shape=jax.ShapeDtypeStruct((B, 1), embeddings.dtype),
        grid=grid,
        in_specs=in_specs,
        out_specs=pl.BlockSpec((bt, 1), lambda i: (i, 0)),
        compiler_params=pltpu.CompilerParams(
            dimension_semantics=("parallel",),
            vmem_limit_bytes=32 * 1024 * 1024),
    )(*args)
    return out[:, 0]


# ----------------------------------------------------------------------------
# pure-JAX reference (mirrors the torch forward, eval mode)
# ----------------------------------------------------------------------------
def scorers_no_id_reference(embeddings, mask, params, *, share_scorer, classme):
    if share_scorer:
        prob = jnp.einsum("bnd,od->bno", embeddings, params["w"])[..., 0] \
               + params["b"][0, 0]
    else:
        prob = jax.nn.sigmoid(
            jnp.einsum("bnd,nd->bn", embeddings, params["w"]) + params["b"][0])
    prob = prob * mask
    if classme:
        prob = jnp.einsum("bn,on->bo", prob, params["cls_w"])[..., 0] \
               + params["cls_b"][0, 0]
    else:
        prob = prob.sum(axis=1) / mask.sum(axis=1)
    return prob


# ----------------------------------------------------------------------------
# demo / self-test
# ----------------------------------------------------------------------------
if __name__ == "__main__":
    B, N, D = 2, 8, 32   # batch=2, num_node-1=8 scored nodes, em_dim=32

    key = jax.random.PRNGKey(0)
    k_e, k_m, k_w, k_b, k_ws, k_bs, k_cw = jax.random.split(key, 7)

    embeddings = jax.random.normal(k_e, (B, N, D), jnp.float32)
    mask = (jax.random.uniform(k_m, (B, N)) > 0.3).astype(jnp.float32)
    mask = mask.at[:, 0].set(1.0)        # keep every row's mask-sum > 0

    # per-node scorers packed as [N, D] (row n = scorer n)
    w_pn = jax.random.normal(k_w, (N, D), jnp.float32) / jnp.sqrt(D)
    b_pn = jax.random.normal(k_b, (1, N), jnp.float32) * 0.1
    # shared scorer: single Linear(D, 1)
    w_sh = jax.random.normal(k_ws, (1, D), jnp.float32) / jnp.sqrt(D)
    b_sh = jax.random.normal(k_bs, (1, 1), jnp.float32) * 0.1
    # classme head: Linear(N, 1)
    cls_w = jax.random.normal(k_cw, (1, N), jnp.float32) / jnp.sqrt(N)
    cls_b = jnp.full((1, 1), 0.05, jnp.float32)

    for share_scorer, classme in [(False, False), (False, True),
                                  (True, False), (True, True)]:
        params = {"w": w_sh if share_scorer else w_pn,
                  "b": b_sh if share_scorer else b_pn}
        if classme:
            params["cls_w"], params["cls_b"] = cls_w, cls_b

        out = scorers_no_id_forward(embeddings, mask, params,
                                    share_scorer=share_scorer, classme=classme)
        out = jax.block_until_ready(out)
        ref = scorers_no_id_reference(embeddings, mask, params,
                                      share_scorer=share_scorer, classme=classme)
        assert out.shape == (B,), out.shape
        assert jnp.allclose(out, ref, atol=1e-4, rtol=1e-4), \
            (share_scorer, classme, float(jnp.max(jnp.abs(out - ref))))

    print("KERNEL_OK")
</pallas_src>

<mosaic_0001>
module attributes {stable_mosaic.version = 11 : i64} {
  func.func @kernel(%arg0: i32, %arg1: memref<2x256xf32, #tpu.memory_space<vmem>>, %arg2: memref<2x8xf32, #tpu.memory_space<vmem>>, %arg3: memref<256x8xf32, #tpu.memory_space<vmem>>, %arg4: memref<1x8xf32, #tpu.memory_space<vmem>>, %arg5: memref<2x1xf32, #tpu.memory_space<vmem>>) attributes {dimension_semantics = [#tpu.dimension_semantics<parallel>], iteration_bounds = array<i64: 1>, scalar_prefetch = 0 : i64, scratch_operands = 0 : i64, tpu.core_type = #tpu.core_type<tc>, window_params = [{transform_indices = @transform_0, window_bounds = array<i64: 2, 256>}, {transform_indices = @transform_1, window_bounds = array<i64: 2, 8>}, {pipeline_mode = #tpu.pipeline_mode<synchronous>, transform_indices = @transform_2, window_bounds = array<i64: 256, 8>}, {pipeline_mode = #tpu.pipeline_mode<synchronous>, transform_indices = @transform_3, window_bounds = array<i64: 1, 8>}, {transform_indices = @transform_4, window_bounds = array<i64: 2, 1>}]} {
    %c0 = arith.constant 0 : index
    %c0_0 = arith.constant 0 : index
    %0 = vector.load %arg1[%c0, %c0_0] : memref<2x256xf32, #tpu.memory_space<vmem>>, vector<2x256xf32>
    %c0_1 = arith.constant 0 : index
    %c0_2 = arith.constant 0 : index
    %1 = vector.load %arg2[%c0_1, %c0_2] : memref<2x8xf32, #tpu.memory_space<vmem>>, vector<2x8xf32>
    %c0_3 = arith.constant 0 : index
    %c0_4 = arith.constant 0 : index
    %2 = vector.load %arg3[%c0_3, %c0_4] : memref<256x8xf32, #tpu.memory_space<vmem>>, vector<256x8xf32>
    %cst = arith.constant dense<0.000000e+00> : vector<2x8xf32>
    %3 = tpu.matmul %0, %2, %cst {dimension_numbers = #tpu.dot_dimension_numbers<[1], [0], [0], [1], [0, 0, 1, 1], [], []>} : vector<2x256xf32>, vector<256x8xf32>, vector<2x8xf32> -> vector<2x8xf32>
    %c0_5 = arith.constant 0 : index
    %c0_6 = arith.constant 0 : index
    %4 = vector.load %arg4[%c0_5, %c0_6] : memref<1x8xf32, #tpu.memory_space<vmem>>, vector<1x8xf32>
    %5 = vector.broadcast %4 : vector<1x8xf32> to vector<2x8xf32>
    %6 = arith.addf %3, %5 : vector<2x8xf32>
    %cst_7 = arith.constant 5.000000e-01 : f32
    %7 = vector.broadcast %cst_7 : f32 to vector<2x8xf32>
    %8 = arith.mulf %7, %6 : vector<2x8xf32>
    %9 = math.tanh %8 : vector<2x8xf32>
    %cst_8 = arith.constant 1.000000e+00 : f32
    %10 = vector.broadcast %cst_8 : f32 to vector<2x8xf32>
    %11 = arith.addf %9, %10 : vector<2x8xf32>
    %cst_9 = arith.constant 5.000000e-01 : f32
    %12 = vector.broadcast %cst_9 : f32 to vector<2x8xf32>
    %13 = arith.mulf %12, %11 : vector<2x8xf32>
    %14 = arith.mulf %13, %1 : vector<2x8xf32>
    %cst_10 = arith.constant dense<0.000000e+00> : vector<2xf32>
    %15 = vector.multi_reduction <add>, %14, %cst_10 [1] : vector<2x8xf32> to vector<2xf32>
    %16 = vector.shape_cast %15 : vector<2xf32> to vector<2x1xf32>
    %cst_11 = arith.constant dense<0.000000e+00> : vector<2xf32>
    %17 = vector.multi_reduction <add>, %1, %cst_11 [1] : vector<2x8xf32> to vector<2xf32>
    %18 = vector.shape_cast %17 : vector<2xf32> to vector<2x1xf32>
    %19 = tpu.reciprocal %18 : vector<2x1xf32> -> vector<2x1xf32>
    %20 = arith.mulf %16, %19 : vector<2x1xf32>
    %c0_12 = arith.constant 0 : index
    %c0_13 = arith.constant 0 : index
    %21 = vector.load %arg5[%c0_12, %c0_13] : memref<2x1xf32, #tpu.memory_space<vmem>>, vector<2x1xf32>
    tpu.vector_store %arg5[%c0_12, %c0_13], %20 {strides = array<i32>} : memref<2x1xf32, #tpu.memory_space<vmem>>, vector<2x1xf32>,
    return
  }
  func.func @transform_0(%arg0: i32) -> (i32, i32) {
    %c0_i32 = arith.constant 0 : i32
    %c0_i32_0 = arith.constant 0 : i32
    return %arg0, %c0_i32 : i32, i32
  }
  func.func @transform_1(%arg0: i32) -> (i32, i32) {
    %c0_i32 = arith.constant 0 : i32
    %c0_i32_0 = arith.constant 0 : i32
    return %arg0, %c0_i32 : i32, i32
  }
  func.func @transform_2(%arg0: i32) -> (i32, i32) {
    %c0_i32 = arith.constant 0 : i32
    %c0_i32_0 = arith.constant 0 : i32
    %c0_i32_1 = arith.constant 0 : i32
    return %c0_i32, %c0_i32_0 : i32, i32
  }
  func.func @transform_3(%arg0: i32) -> (i32, i32) {
    %c0_i32 = arith.constant 0 : i32
    %c0_i32_0 = arith.constant 0 : i32
    %c0_i32_1 = arith.constant 0 : i32
    return %c0_i32, %c0_i32_0 : i32, i32
  }
  func.func @transform_4(%arg0: i32) -> (i32, i32) {
    %c0_i32 = arith.constant 0 : i32
    %c0_i32_0 = arith.constant 0 : i32
    return %arg0, %c0_i32 : i32, i32
  }
}

</mosaic_0001>

<llo_original>
// kernel: tpu_custom_call.1
$region0: #{tpu_custom_call.1}
  #allocation0 [shape = 'u32[]', space=smem, size = 0x4, offset = 0x4, fixed_abs, tag = 'smem constant byte address 0x4 - core index']
  #allocation1 [shape = 'u32[144,128]{1,0:T(1,128)}', space=vmem, size = 0x12000, scoped, tag = 'internal scratch']
  %s0 = inlined_call_operand.vmem [shape: f32[2,256], index: 0, kind: input, shape index: {}]
  %s1 = inlined_call_operand.vmem [shape: f32[2,8], index: 1, kind: input, shape index: {}]
  %s2 = inlined_call_operand.vmem [shape: f32[256,8], index: 2, kind: input, shape index: {}]
  %s3 = inlined_call_operand.vmem [shape: f32[1,8], index: 3, kind: input, shape index: {}]
  %s4 = inlined_call_operand.vmem [shape: f32[2,1], index: 4, kind: output, shape index: {}]
  %s5 = sld [smem:[#allocation0]]
  $region26: #{tpu_custom_call.1} parent=0
    _
  %s7 = ssub.s32 1, %s5
  %s8 = scalar_select 0, %s7, %s5
  // Predicated region
  $region2: #{tpu_custom_call.1} parent=0 // pred_check
    _
  $region3: #{tpu_custom_call.1} parent=0 // pred_check_branch
    %10 = sbr.rel (0) target = $region5
  $region4: #{tpu_custom_call.1} parent=0 // pred_region
    _
  $region5: #{tpu_custom_call.1} parent=0 // pred_fallthru
    _
  // Predicated region
  $region6: #{tpu_custom_call.1} parent=0 // pred_check
    _
  $region7: #{tpu_custom_call.1} parent=0 // pred_check_branch
    %12 = sbr.rel (0) target = $region9
  $region8: #{tpu_custom_call.1} parent=0 // pred_region
    _
  $region9: #{tpu_custom_call.1} parent=0 // pred_fallthru
    _
  // Predicated region
  $region10: #{tpu_custom_call.1} parent=0 // pred_check
    _
  $region11: #{tpu_custom_call.1} parent=0 // pred_check_branch
    %14 = sbr.rel (0) target = $region13
  $region12: #{tpu_custom_call.1} parent=0 // pred_region
    _
  $region13: #{tpu_custom_call.1} parent=0 // pred_fallthru
    _
  // Predicated region
  $region14: #{tpu_custom_call.1} parent=0 // pred_check
    _
  $region15: #{tpu_custom_call.1} parent=0 // pred_check_branch
    %16 = sbr.rel (0) target = $region17
  $region16: #{tpu_custom_call.1} parent=0 // pred_region
    _
  $region17: #{tpu_custom_call.1} parent=0 // pred_fallthru
    _
  %v17 = vld [vmem:[%s0] sm:$0xf]
  %v18 = vld [vmem:[%s1] sm:$0x3]
  %v19 = vld [vmem:[%s2] sm:$0xff]
  %v20 = vld [vmem:[%s2 + $0x8] sm:$0xff]
  %v21 = vld [vmem:[%s2 + $0x10] sm:$0xff]
  %v22 = vld [vmem:[%s2 + $0x18] sm:$0xff]
  %v23 = vld [vmem:[%s2 + $0x20] sm:$0xff]
  %v24 = vld [vmem:[%s2 + $0x28] sm:$0xff]
  %v25 = vld [vmem:[%s2 + $0x30] sm:$0xff]
  %v26 = vld [vmem:[%s2 + $0x38] sm:$0xff]
  %v27 = vld [vmem:[%s2 + $0x40] sm:$0xff]
  %v28 = vld [vmem:[%s2 + $0x48] sm:$0xff]
  %v29 = vld [vmem:[%s2 + $0x50] sm:$0xff]
  %v30 = vld [vmem:[%s2 + $0x58] sm:$0xff]
  %v31 = vld [vmem:[%s2 + $0x60] sm:$0xff]
  %v32 = vld [vmem:[%s2 + $0x68] sm:$0xff]
  %v33 = vld [vmem:[%s2 + $0x70] sm:$0xff]
  %v34 = vld [vmem:[%s2 + $0x78] sm:$0xff]
  %v35 = vld [vmem:[%s2 + $0x80] sm:$0xff]
  %v36 = vld [vmem:[%s2 + $0x88] sm:$0xff]
  %v37 = vld [vmem:[%s2 + $0x90] sm:$0xff]
  %v38 = vld [vmem:[%s2 + $0x98] sm:$0xff]
  %v39 = vld [vmem:[%s2 + $0xa0] sm:$0xff]
  %v40 = vld [vmem:[%s2 + $0xa8] sm:$0xff]
  %v41 = vld [vmem:[%s2 + $0xb0] sm:$0xff]
  %v42 = vld [vmem:[%s2 + $0xb8] sm:$0xff]
  %v43 = vld [vmem:[%s2 + $0xc0] sm:$0xff]
  %v44 = vld [vmem:[%s2 + $0xc8] sm:$0xff]
  %v45 = vld [vmem:[%s2 + $0xd0] sm:$0xff]
  %v46 = vld [vmem:[%s2 + $0xd8] sm:$0xff]
  %v47 = vld [vmem:[%s2 + $0xe0] sm:$0xff]
  %v48 = vld [vmem:[%s2 + $0xe8] sm:$0xff]
  %v49 = vld [vmem:[%s2 + $0xf0] sm:$0xff]
  %v50 = vld [vmem:[%s2 + $0xf8] sm:$0xff]
  %v51 = vld [vmem:[%s3] sm:$0x1]
  %v53 = vlaneseq
  %v54 = vshrl.u32 %v53, 7
  %v55 = vsub.s32 0, %v54
  %v56 = vrot.slane %v51, %v55
  %v60 = vunpack.c.l.s4 1983009808
  %v61 = vunpack.c.0.s8 %v60
  %v62 = vlaneseq
  %v63 = vshrl.u32 %v62, 7
  %v64 = vsub.s32 %v61, %v63
  %v65 = vrot.slane %v17, %v64
  %v66 = vcombine.high %v65, %v65
  %69 = vmatprep.subr.mxu0 0.0
  %70 = vmatpush1.msra.mxu0 %v19
  %71 = vmatprep.subr.mxu0 0.0
  %72 = vmatpush1.msra.mxu0 %v20
  %73 = vmatprep.subr.mxu0 0.0
  %74 = vmatpush1.msra.mxu0 %v21
  %75 = vmatprep.subr.mxu0 0.0
  %76 = vmatpush1.msra.mxu0 %v22
  %77 = vmatprep.subr.mxu0 0.0
  %78 = vmatpush1.msra.mxu0 %v23
  %79 = vmatprep.subr.mxu0 0.0
  %80 = vmatpush1.msra.mxu0 %v24
  %81 = vmatprep.subr.mxu0 0.0
  %82 = vmatpush1.msra.mxu0 %v25
  %83 = vmatprep.subr.mxu0 0.0
  %84 = vmatpush1.msra.mxu0 %v26
  %85 = vmatprep.subr.mxu0 0.0
  %86 = vmatpush1.msra.mxu0 %v27
  %87 = vmatprep.subr.mxu0 0.0
  %88 = vmatpush1.msra.mxu0 %v28
  %89 = vmatprep.subr.mxu0 0.0
  %90 = vmatpush1.msra.mxu0 %v29
  %91 = vmatprep.subr.mxu0 0.0
  %92 = vmatpush1.msra.mxu0 %v30
  %93 = vmatprep.subr.mxu0 0.0
  %94 = vmatpush1.msra.mxu0 %v31
  %95 = vmatprep.subr.mxu0 0.0
  %96 = vmatpush1.msra.mxu0 %v32
  %97 = vmatprep.subr.mxu0 0.0
  %98 = vmatpush1.msra.mxu0 %v33
  %99 = vmatprep.subr.mxu0 0.0
  %100 = vmatpush1.msra.mxu0 %v34
  %101 = vmatprep.subr.mxu0 0.0
  %102 = vmatpush1.msra.mxu0 %v35
  %103 = vmatprep.subr.mxu0 0.0
  %104 = vmatpush1.msra.mxu0 %v36
  %105 = vmatprep.subr.mxu0 0.0
  %106 = vmatpush1.msra.mxu0 %v37
  %107 = vmatprep.subr.mxu0 0.0
  %108 = vmatpush1.msra.mxu0 %v38
  %109 = vmatprep.subr.mxu0 0.0
  %110 = vmatpush1.msra.mxu0 %v39
  %111 = vmatprep.subr.mxu0 0.0
  %112 = vmatpush1.msra.mxu0 %v40
  %113 = vmatprep.subr.mxu0 0.0
  %114 = vmatpush1.msra.mxu0 %v41
  %115 = vmatprep.subr.mxu0 0.0
  %116 = vmatpush1.msra.mxu0 %v42
  %117 = vmatprep.subr.mxu0 0.0
  %118 = vmatpush1.msra.mxu0 %v43
  %119 = vmatprep.subr.mxu0 0.0
  %120 = vmatpush1.msra.mxu0 %v44
  %121 = vmatprep.subr.mxu0 0.0
  %122 = vmatpush1.msra.mxu0 %v45
  %123 = vmatprep.subr.mxu0 0.0
  %124 = vmatpush1.msra.mxu0 %v46
  %125 = vmatprep.subr.mxu0 0.0
  %126 = vmatpush1.msra.mxu0 %v47
  %127 = vmatprep.subr.mxu0 0.0
  %128 = vmatpush1.msra.mxu0 %v48
  %129 = vmatprep.subr.mxu0 0.0
  %130 = vmatpush1.msra.mxu0 %v49
  %131 = vmatprep.subr.mxu0 0.0
  %132 = vmatpush1.msra.mxu0 %v50
  %133 = vmatprep.mubr.f32.mxu0 %v66
  %134 = vmatmul.mubr.f32.gmra.mrb[0].mxu0 %v65
  %v135 = vpop.f32.mrb[0].mxu0
  %v136 = vadd.f32 %v56, %v135
  %v137 = vpop.f32.mrb[0].mxu0
  %138 = vdwg.mxu0
  %v139 = vmul.f32 %v136, 0.5
  %v140 = vtanh.pop %v139
  %v141 = vadd.f32 %v140, 1.0
  %v142 = vmul.f32 %v141, 0.5
  %v143 = vmul.f32 %v142, %v18
  %vm144 = vcmask 58368
  %v145 = vsel %vm144, %v143, 0.0
  %146 = vadd.xlane.f32.xlu0 %v145
  %v147 = vpop.xlane.xlu0 %146
  %v148 = vsel %vm144, %v18, 0.0
  %149 = vadd.xlane.f32.xlu0 %v148
  %v150 = vpop.xlane.xlu0 %149
  %v151 = vrcp.pop %v150
  %v152 = vmul.f32 %v147, %v151
  %vm153 = vcmask 1024
  %154 = vst.msk [vmem:[%s4] sm:$0x3] %vm153, %v152
  // Predicated region
  $region18: #{tpu_custom_call.1} parent=0 // pred_check
    _
  $region19: #{tpu_custom_call.1} parent=0 // pred_check_branch
    %156 = sbr.rel (0) target = $region21
  $region20: #{tpu_custom_call.1} parent=0 // pred_region
    _
  $region21: #{tpu_custom_call.1} parent=0 // pred_fallthru
    _
  // Predicated region
  $region22: #{tpu_custom_call.1} parent=0 // pred_check
    _
  $region23: #{tpu_custom_call.1} parent=0 // pred_check_branch
    %158 = sbr.rel (0) target = $region25
  $region24: #{tpu_custom_call.1} parent=0 // pred_region
    _
  $region25: #{tpu_custom_call.1} parent=0 // pred_fallthru
    _

</llo_original>
